<compile_context>
chip_gen: v7x
topology: tpu7x:2x2x1
jax: 0.10.0
libtpu: 0.0.40
codegen_flags: <defaults>
</compile_context>

<pallas_src>
import jax
import jax.numpy as jnp
from jax import lax
from jax.experimental import pallas as pl
from jax.experimental.pallas import tpu as pltpu  # noqa: F401  (TPU backend)

N, F_IN, F_OUT = 5, 100, 10
F_AUG = F_IN + 1  # bias folded in as an extra "ones" input feature


def _model_kernel(xa_ref, wa_ref, o_ref):
    xa = xa_ref[...]   # (N, F_AUG)      -> 1 padded vreg (8 x 128)
    wa = wa_ref[...]   # (F_OUT, F_AUG)  -> 2 padded vregs (PyTorch layout + bias col)

    # y^T = W_aug @ x_aug^T : NT contraction of the feature axis on the MXU.
    yt = lax.dot_general(wa, xa, (((1,), (1,)), ((), ())),
                         preferred_element_type=jnp.float32)       # (F_OUT, N)

    # Softmax pieces needed only to derive the (float) gather index.
    m = jnp.max(yt, axis=0, keepdims=True)                         # (1, N)
    p = jnp.exp(yt - m)                                            # (F_OUT, N)
    sp = jnp.sum(p, axis=0, keepdims=True)                         # (1, N)
    s3 = p[3:4, :] / sp                                            # (1, N), same div as reference

    # trunc(s3) in {0, 1}: it is 1 iff the normalized value rounds to >= 1.0.
    sel = s3 >= 1.0                                                # (1, N) bool

    # log(s[idx] / s[4]) == y[idx] - y[4]; idx in {0,1} -> 2-way row select.
    o_ref[...] = jnp.where(sel, yt[1:2, :], yt[0:1, :]) - yt[4:5, :]   # (1, N)


def model_forward(x, w_t, b):
    """x: (N, F_IN), w_t: (F_OUT, F_IN) (PyTorch layout), b: (F_OUT,)."""
    n = x.shape[0]
    # Fold the bias into the contraction: [x, 1] @ [W, b]^T  == x @ W^T + b.
    xa = jnp.concatenate([x, jnp.ones((n, 1), dtype=x.dtype)], axis=1)       # (N, 101)
    wa = jnp.concatenate([w_t, b.reshape(F_OUT, 1)], axis=1)                 # (10, 101)

    out_row = pl.pallas_call(
        _model_kernel,
        out_shape=jax.ShapeDtypeStruct((1, n), jnp.float32),
        in_specs=[
            pl.BlockSpec((n, F_AUG), lambda: (0, 0)),
            pl.BlockSpec((F_OUT, F_AUG), lambda: (0, 0)),
        ],
        out_specs=pl.BlockSpec((1, n), lambda: (0, 0)),
    )(xa, wa)
    return out_row.reshape(n, 1)


def reference_forward(x, w_t, b):
    """Literal translation of the original module (float index -> trunc-cast)."""
    y = x @ w_t.T + b[None, :]
    s = jax.nn.softmax(y, axis=-1)
    f = s[:, 3:4]
    e = s[:, 4:5]
    idx = f.astype(jnp.int32)
    g = jnp.take_along_axis(s, idx, axis=-1)
    return jnp.log(g / e)


if __name__ == "__main__":
    key = jax.random.PRNGKey(0)
    kx, kw, kb = jax.random.split(key, 3)

    # Input (matches torch.randn(5, 100)).
    x = jax.random.normal(kx, (N, F_IN), dtype=jnp.float32)

    # nn.Linear(100, 10) init: U(-1/sqrt(fan_in), 1/sqrt(fan_in)); weight kept
    # in PyTorch's native (out_features, in_features) layout.
    bound = 1.0 / (F_IN ** 0.5)
    w_t = jax.random.uniform(kw, (F_OUT, F_IN), dtype=jnp.float32,
                             minval=-bound, maxval=bound)
    b = jax.random.uniform(kb, (F_OUT,), dtype=jnp.float32,
                           minval=-bound, maxval=bound)

    out = model_forward(x, w_t, b)
    jax.block_until_ready(out)

    ref = reference_forward(x, w_t, b)
    assert out.shape == (N, 1)
    assert jnp.allclose(out, ref, atol=1e-4, rtol=1e-4), (out, ref)

    print("KERNEL_OK")
</pallas_src>

<mosaic_0001>
module attributes {stable_mosaic.version = 11 : i64} {
  func.func @_model_kernel(%arg0: memref<5x101xf32, #tpu.memory_space<vmem>>, %arg1: memref<10x101xf32, #tpu.memory_space<vmem>>, %arg2: memref<1x5xf32, #tpu.memory_space<vmem>>) attributes {dimension_semantics = [], scalar_prefetch = 0 : i64, scratch_operands = 0 : i64, tpu.core_type = #tpu.core_type<tc>} {
    %c0 = arith.constant 0 : index
    %c0_0 = arith.constant 0 : index
    %0 = vector.load %arg0[%c0, %c0_0] : memref<5x101xf32, #tpu.memory_space<vmem>>, vector<5x101xf32>
    %c0_1 = arith.constant 0 : index
    %c0_2 = arith.constant 0 : index
    %1 = vector.load %arg1[%c0_1, %c0_2] : memref<10x101xf32, #tpu.memory_space<vmem>>, vector<10x101xf32>
    %cst = arith.constant dense<0.000000e+00> : vector<10x5xf32>
    %2 = tpu.matmul %1, %0, %cst {dimension_numbers = #tpu.dot_dimension_numbers<[1], [1], [0], [0], [0, 0, 1, 0], [], []>} : vector<10x101xf32>, vector<5x101xf32>, vector<10x5xf32> -> vector<10x5xf32>
    %cst_3 = arith.constant dense<0xFF800000> : vector<5xf32>
    %3 = vector.multi_reduction <maximumf>, %2, %cst_3 [0] : vector<10x5xf32> to vector<5xf32>
    %4 = vector.shape_cast %3 : vector<5xf32> to vector<1x5xf32>
    %5 = vector.broadcast %4 : vector<1x5xf32> to vector<10x5xf32>
    %6 = arith.subf %2, %5 : vector<10x5xf32>
    %7 = math.exp %6 : vector<10x5xf32>
    %cst_4 = arith.constant dense<0.000000e+00> : vector<5xf32>
    %8 = vector.multi_reduction <add>, %7, %cst_4 [0] : vector<10x5xf32> to vector<5xf32>
    %9 = vector.shape_cast %8 : vector<5xf32> to vector<1x5xf32>
    %10 = vector.extract_strided_slice %7 {offsets = [3, 0], sizes = [1, 5], strides = [1, 1]} : vector<10x5xf32> to vector<1x5xf32>
    %11 = arith.divf %10, %9 : vector<1x5xf32>
    %cst_5 = arith.constant 1.000000e+00 : f32
    %12 = vector.broadcast %cst_5 : f32 to vector<1x5xf32>
    %13 = arith.cmpf oge, %11, %12 : vector<1x5xf32>
    %14 = vector.extract_strided_slice %2 {offsets = [1, 0], sizes = [1, 5], strides = [1, 1]} : vector<10x5xf32> to vector<1x5xf32>
    %15 = vector.extract_strided_slice %2 {offsets = [0, 0], sizes = [1, 5], strides = [1, 1]} : vector<10x5xf32> to vector<1x5xf32>
    %16 = arith.select %13, %14, %15 : vector<1x5xi1>, vector<1x5xf32>
    %17 = vector.extract_strided_slice %2 {offsets = [4, 0], sizes = [1, 5], strides = [1, 1]} : vector<10x5xf32> to vector<1x5xf32>
    %18 = arith.subf %16, %17 : vector<1x5xf32>
    %c0_6 = arith.constant 0 : index
    %c0_7 = arith.constant 0 : index
    %19 = vector.load %arg2[%c0_6, %c0_7] : memref<1x5xf32, #tpu.memory_space<vmem>>, vector<1x5xf32>
    tpu.vector_store %arg2[%c0_6, %c0_7], %18 {strides = array<i32>} : memref<1x5xf32, #tpu.memory_space<vmem>>, vector<1x5xf32>,
    return
  }
}

</mosaic_0001>

<llo_original>
// kernel: tpu_custom_call.1
$region0: #{tpu_custom_call.1}
  #allocation0 [shape = 'u32[]', space=smem, size = 0x4, offset = 0x4, fixed_abs, tag = 'smem constant byte address 0x4 - core index']
  #allocation1 [shape = 'u32[144,128]{1,0:T(1,128)}', space=vmem, size = 0x12000, scoped, tag = 'internal scratch']
  %s0 = inlined_call_operand.hbm [shape: f32[5,101], index: 0, kind: input, shape index: {}]
  %s1 = inlined_call_operand.hbm [shape: f32[10,101], index: 1, kind: input, shape index: {}]
  %s2 = inlined_call_operand.hbm [shape: f32[1,5], index: 2, kind: output, shape index: {}]
  %s3 = sld [smem:[#allocation0]]
  $region26: #{tpu_custom_call.1} parent=0
    _
  %s5 = ssub.s32 1, %s3
  %s6 = scalar_select 0, %s5, %s3
  $region1: #{tpu_custom_call.1} parent=0
    #allocation2 [shape = 'u8[4096]{0}', space=vmem, size = 0x1000, scoped, tag = 'input window, operand 0, single buffered']
    #allocation3 [shape = 's32[1]{0}', space=sflag, size = 0x4, scoped, tag = 'scoped memory for tpu_custom_call.1']
    #allocation4 [shape = 's32[1]{0}', space=sflag, size = 0x4, scoped, tag = 'scoped memory for tpu_custom_call.1']
    #allocation5 [shape = 'u8[8192]{0}', space=vmem, size = 0x2000, scoped, tag = 'input window, operand 1, single buffered']
    #allocation6 [shape = 's32[1]{0}', space=sflag, size = 0x4, scoped, tag = 'scoped memory for tpu_custom_call.1']
    #allocation7 [shape = 'u8[512]{0}', space=vmem, size = 0x400, scoped, tag = 'output window, operand 0, single buffered']
    %7 = vsyncpa [#allocation3], 0
    %8 = vsyncpa [#allocation6], 0
    %9 = vsyncpa [#allocation4], 0
    // Predicated region
    $region2: #{tpu_custom_call.1} parent=1 // pred_check
      _
    $region3: #{tpu_custom_call.1} parent=1 // pred_check_branch
      %11 = sbr.rel (0) target = $region5
    $region4: #{tpu_custom_call.1} parent=1 // pred_region
      %s13 = ssub.s32 128, 128
      %14 = vsyncadd [#allocation3], %s13
      %s16 = sshll.u32 [#allocation2], 4
      %s17 = int_to_ptr.vmem [resolvable:$true] %s16
      %19 = dma.hbm_to_vmem [thread:$0]  %s0, 128, %s17, [#allocation3]
    $region5: #{tpu_custom_call.1} parent=1 // pred_fallthru
      _
    // Predicated region
    $region6: #{tpu_custom_call.1} parent=1 // pred_check
      _
    $region7: #{tpu_custom_call.1} parent=1 // pred_check_branch
      %21 = sbr.rel (0) target = $region9
    $region8: #{tpu_custom_call.1} parent=1 // pred_region
      %s23 = ssub.s32 256, 256
      %24 = vsyncadd [#allocation6], %s23
      %s25 = sshll.u32 [#allocation5], 4
      %s26 = int_to_ptr.vmem [resolvable:$true] %s25
      %31 = dma.hbm_to_vmem [thread:$0]  %s1, 256, %s26, [#allocation6], 128, 128, 8
    $region9: #{tpu_custom_call.1} parent=1 // pred_fallthru
      _
    // Predicated region
    $region10: #{tpu_custom_call.1} parent=1 // pred_check
      _
    $region11: #{tpu_custom_call.1} parent=1 // pred_check_branch
      %33 = sbr.rel (0) target = $region13
    $region12: #{tpu_custom_call.1} parent=1 // pred_region
      %34 = dma.done [#allocation3], 128
    $region13: #{tpu_custom_call.1} parent=1 // pred_fallthru
      _
    // Predicated region
    $region14: #{tpu_custom_call.1} parent=1 // pred_check
      _
    $region15: #{tpu_custom_call.1} parent=1 // pred_check_branch
      %36 = sbr.rel (0) target = $region17
    $region16: #{tpu_custom_call.1} parent=1 // pred_region
      %37 = dma.done [#allocation6], 256
    $region17: #{tpu_custom_call.1} parent=1 // pred_fallthru
      _
    %v38 = vld [vmem:[#allocation2] sm:$0x1f]
    %v39 = vld [vmem:[#allocation5] sm:$0xff]
    %v40 = vld [vmem:[#allocation5 + $0x8] sm:$0x3]
    %vm41 = vcmask 826368
    %v43 = vsel %vm41, %v39, 0
    %v46 = vsel %vm41, %v40, 0
    %v49 = vsel %vm41, %v38, 0
    %51 = vmatprep.subr.mxu0 0.0
    %52 = vmatpush1.xpose.msra.mxu0 %v49
    %53 = vmatprep.subr.mxu0 0.0
    %54 = vmatpush1.xpose.msra.mxu0 0.0
    %55 = vmatprep.subr.mxu0 0.0
    %56 = vmatpush1.xpose.msra.mxu0 0.0
    %57 = vmatprep.subr.mxu0 0.0
    %58 = vmatpush1.xpose.msra.mxu0 0.0
    %59 = vmatprep.subr.mxu0 0.0
    %60 = vmatpush1.xpose.msra.mxu0 0.0
    %61 = vmatprep.subr.mxu0 0.0
    %62 = vmatpush1.xpose.msra.mxu0 0.0
    %63 = vmatprep.subr.mxu0 0.0
    %64 = vmatpush1.xpose.msra.mxu0 0.0
    %65 = vmatprep.subr.mxu0 0.0
    %66 = vmatpush1.xpose.msra.mxu0 0.0
    %67 = vmatprep.subr.mxu0 0.0
    %68 = vmatpush1.xpose.msra.mxu0 0.0
    %69 = vmatprep.subr.mxu0 0.0
    %70 = vmatpush1.xpose.msra.mxu0 0.0
    %71 = vmatprep.subr.mxu0 0.0
    %72 = vmatpush1.xpose.msra.mxu0 0.0
    %73 = vmatprep.subr.mxu0 0.0
    %74 = vmatpush1.xpose.msra.mxu0 0.0
    %75 = vmatprep.subr.mxu0 0.0
    %76 = vmatpush1.xpose.msra.mxu0 0.0
    %77 = vmatprep.subr.mxu0 0.0
    %78 = vmatpush1.xpose.msra.mxu0 0.0
    %79 = vmatprep.subr.mxu0 0.0
    %80 = vmatpush1.xpose.msra.mxu0 0.0
    %81 = vmatprep.subr.mxu0 0.0
    %82 = vmatpush1.xpose.msra.mxu0 0.0
    %83 = vmatprep.subr.mxu0 0.0
    %84 = vmatpush1.xpose.msra.mxu0 0.0
    %85 = vmatprep.subr.mxu0 0.0
    %86 = vmatpush1.xpose.msra.mxu0 0.0
    %87 = vmatprep.subr.mxu0 0.0
    %88 = vmatpush1.xpose.msra.mxu0 0.0
    %89 = vmatprep.subr.mxu0 0.0
    %90 = vmatpush1.xpose.msra.mxu0 0.0
    %91 = vmatprep.subr.mxu0 0.0
    %92 = vmatpush1.xpose.msra.mxu0 0.0
    %93 = vmatprep.subr.mxu0 0.0
    %94 = vmatpush1.xpose.msra.mxu0 0.0
    %95 = vmatprep.subr.mxu0 0.0
    %96 = vmatpush1.xpose.msra.mxu0 0.0
    %97 = vmatprep.subr.mxu0 0.0
    %98 = vmatpush1.xpose.msra.mxu0 0.0
    %99 = vmatprep.subr.mxu0 0.0
    %100 = vmatpush1.xpose.msra.mxu0 0.0
    %101 = vmatprep.subr.mxu0 0.0
    %102 = vmatpush1.xpose.msra.mxu0 0.0
    %103 = vmatprep.subr.mxu0 0.0
    %104 = vmatpush1.xpose.msra.mxu0 0.0
    %105 = vmatprep.subr.mxu0 0.0
    %106 = vmatpush1.xpose.msra.mxu0 0.0
    %107 = vmatprep.subr.mxu0 0.0
    %108 = vmatpush1.xpose.msra.mxu0 0.0
    %109 = vmatprep.subr.mxu0 0.0
    %110 = vmatpush1.xpose.msra.mxu0 0.0
    %111 = vmatprep.subr.mxu0 0.0
    %112 = vmatpush1.xpose.msra.mxu0 0.0
    %113 = vmatprep.subr.mxu0 0.0
    %114 = vmatpush1.xpose.msra.mxu0 0.0
    %115 = vmatprep.mubr.f32.mxu0 0.0
    %116 = vmatmul.mubr.f32.gmra.mrb[0].mxu0 %v43
    %v117 = vpop.f32.mrb[0].mxu0
    %v118 = vadd.f32 0.0, %v117
    %v119 = vpop.f32.mrb[0].mxu0
    %120 = vmatprep.mubr.f32.mxu0 0.0
    %121 = vmatmul.mubr.f32.gmra.mrb[0].mxu0 %v46
    %v122 = vpop.f32.mrb[0].mxu0
    %v123 = vadd.f32 0.0, %v122
    %v124 = vpop.f32.mrb[0].mxu0
    %125 = vdwg.mxu0
    %vm126 = vcmask 39936
    %v127 = vsel %vm126, %v118, -inf
    %vm128 = vcmask 33792
    %v129 = vsel %vm128, %v123, -inf
    %v130 = vmax.f32 %v127, %v129
    %v131 = vrot.slane %v130, 4
    %v132 = vmax.f32 %v130, %v131
    %v133 = vrot.slane %v132, 2
    %v134 = vmax.f32 %v132, %v133
    %v135 = vrot.slane %v134, 1
    %v136 = vmax.f32 %v134, %v135
    %v137 = vsub.f32 %v118, %v136
    %v138 = vsub.f32 %v123, %v136
    %v139 = vmul.f32 %v137, 1.442695
    %v140 = vpow.pop %v139
    %v141 = vmul.f32 %v138, 1.442695
    %v142 = vpow.pop %v141
    %v143 = vsel %vm126, %v140, 0.0
    %v144 = vsel %vm128, %v142, 0.0
    %v145 = vadd.f32 %v143, %v144
    %v146 = vrot.slane %v145, 4
    %v147 = vadd.f32 %v145, %v146
    %v148 = vrot.slane %v147, 2
    %v149 = vadd.f32 %v147, %v148
    %v150 = vrot.slane %v149, 1
    %v151 = vadd.f32 %v149, %v150
    %v152 = vrcp.pop %v151
    %v153 = vmul.f32 %v140, %v152
    %vm154 = vcmp.ge.f32.partialorder %v153, 1.0
    %v156 = vrot.slane %v118, 6
    %v158 = vrot.slane %v118, 5
    %v160 = vsel %vm154, %v156, %v158
    %v161 = vrot.slane %v118, 1
    %v163 = vsub.f32 %v160, %v161
    %vm164 = vcmask 35843
    %165 = vst.msk [vmem:[#allocation7 - $0x3] sm:$0x8] %vm164, %v163
    // Predicated region
    $region18: #{tpu_custom_call.1} parent=1 // pred_check
      _
    $region19: #{tpu_custom_call.1} parent=1 // pred_check_branch
      %167 = sbr.rel (0) target = $region21
    $region20: #{tpu_custom_call.1} parent=1 // pred_region
      %s169 = ssub.s32 16, 16
      %170 = vsyncadd [#allocation4], %s169
      %s172 = sshll.u32 [#allocation7], 4
      %s173 = int_to_ptr.vmem [resolvable:$true] %s172
      %175 = dma.vmem_to_hbm [thread:$0]  %s173, 16, %s2, [#allocation4]
    $region21: #{tpu_custom_call.1} parent=1 // pred_fallthru
      _
    // Predicated region
    $region22: #{tpu_custom_call.1} parent=1 // pred_check
      _
    $region23: #{tpu_custom_call.1} parent=1 // pred_check_branch
      %177 = sbr.rel (0) target = $region25
    $region24: #{tpu_custom_call.1} parent=1 // pred_region
      %178 = dma.done [#allocation4], 16
    $region25: #{tpu_custom_call.1} parent=1 // pred_fallthru
      _
    %179 = vsyncpa [#allocation3], 1
    %180 = vsyncpa [#allocation6], 1
    %181 = vsyncpa [#allocation4], 1

</llo_original>
